<compile_context>
chip_gen: v5e
topology: v5e:2x2
jax: 0.10.0
libtpu: 0.0.40
codegen_flags: <defaults>
</compile_context>

<pallas_src>
import jax
import jax.numpy as jnp
from jax.experimental import pallas as pl
from jax.experimental.pallas import tpu as pltpu


def linear_kernel(x_ref, w_ref, b_ref, o_ref):
    """x_ref: (IN, tb) f32 VMEM (feature-minor tile of x^T)
       w_ref: (IN,)    f32 SMEM (flattened nn.Linear weight row)
       b_ref: (1,)     f32 SMEM
       o_ref: (1, tb)  f32 VMEM (lane-dense output row)"""
    in_features = x_ref.shape[0]  # static (10)
    # Unrolled scalar x vector FMAs: pure VPU work, all 128 lanes useful.
    acc = x_ref[pl.ds(0, 1), :] * w_ref[0]          # (1, tb)
    for k in range(1, in_features):
        acc = acc + x_ref[pl.ds(k, 1), :] * w_ref[k]
    o_ref[...] = (acc + b_ref[0]).astype(o_ref.dtype)


def linear_pallas(x, weight, bias, *, max_tile=8192):
    """x: (B, IN) f32; weight: (OUT, IN) f32 (PyTorch layout); bias: (OUT,) f32.

    Specialized to OUT == 1 (the nn.Linear(10, 1) of module A).
    """
    B, IN = x.shape
    OUT, IN_w = weight.shape
    assert IN == IN_w and OUT == 1, "kernel specialized to Linear(IN, 1)"

    # Lane-dense batch tile: multiple of 128, large to amortize per-step overhead.
    tb = min(max_tile, ((B + 127) // 128) * 128)
    n_tiles = pl.cdiv(B, tb)

    # Feature-minor layout for clean, contiguous DMA and a lane-dense output.
    xt = x.T                                            # (IN, B)
    w_smem = weight.reshape(IN).astype(jnp.float32)     # (IN,) scalars in SMEM
    b_smem = bias.reshape(OUT).astype(jnp.float32)      # (1,)  scalar in SMEM

    out = pl.pallas_call(
        linear_kernel,
        out_shape=jax.ShapeDtypeStruct((1, B), x.dtype),
        grid_spec=pltpu.PrefetchScalarGridSpec(
            num_scalar_prefetch=0,
            grid=(n_tiles,),
            in_specs=[
                pl.BlockSpec((IN, tb), lambda i: (0, i)),            # x^T tiles
                pl.BlockSpec(memory_space=pltpu.MemorySpace.SMEM),   # weights
                pl.BlockSpec(memory_space=pltpu.MemorySpace.SMEM),   # bias
            ],
            out_specs=pl.BlockSpec((1, tb), lambda i: (0, i)),       # lane-dense
        ),
        compiler_params=pltpu.CompilerParams(
            dimension_semantics=("parallel",),   # 2-TC sharding on v7x when n_tiles > 1
            vmem_limit_bytes=32 * 1024 * 1024,   # explicit (v5e default scoped is 16 MiB)
        ),
    )(xt, w_smem, b_smem)

    # (1, B) and (B, 1) share the same contiguous layout; reshape is free.
    return out.reshape(B, OUT)


if __name__ == "__main__":
    key = jax.random.PRNGKey(0)
    kx, kw, kb, kx2 = jax.random.split(key, 4)

    B, IN, OUT = 1, 10, 1  # shape from the PyTorch spec: x = torch.randn(1, 10)
    x = jax.random.normal(kx, (B, IN), dtype=jnp.float32)

    # Deterministic parameter init mimicking nn.Linear default
    # (uniform in [-1/sqrt(IN), 1/sqrt(IN)]).
    bound = 1.0 / (IN ** 0.5)
    weight = jax.random.uniform(kw, (OUT, IN), minval=-bound, maxval=bound,
                                dtype=jnp.float32)
    bias = jax.random.uniform(kb, (OUT,), minval=-bound, maxval=bound,
                              dtype=jnp.float32)

    # Spec-shaped run (B=1): single partial tile, ragged lanes masked on store.
    y = linear_pallas(x, weight, bias)
    jax.block_until_ready(y)
    y_ref = x @ weight.T + bias
    assert y.shape == (B, OUT)
    assert jnp.allclose(y, y_ref, atol=1e-5), (y, y_ref)

    # Multi-tile + ragged-tail path: grid of 3 tiles of 1024, last tile partial.
    B2 = 2500
    x2 = jax.random.normal(kx2, (B2, IN), dtype=jnp.float32)
    y2 = linear_pallas(x2, weight, bias, max_tile=1024)
    jax.block_until_ready(y2)
    y2_ref = x2 @ weight.T + bias
    assert y2.shape == (B2, OUT)
    assert jnp.allclose(y2, y2_ref, atol=1e-5)

    print("KERNEL_OK")
</pallas_src>

<mosaic_0001>
module attributes {stable_mosaic.version = 11 : i64} {
  func.func @linear_kernel(%arg0: i32, %arg1: memref<10x128xf32, #tpu.memory_space<vmem>>, %arg2: memref<10xf32, #tpu.memory_space<smem>>, %arg3: memref<1xf32, #tpu.memory_space<smem>>, %arg4: memref<1x128xf32, #tpu.memory_space<vmem>>) attributes {dimension_semantics = [#tpu.dimension_semantics<parallel>], iteration_bounds = array<i64: 1>, scalar_prefetch = 0 : i64, scratch_operands = 0 : i64, tpu.core_type = #tpu.core_type<tc>, window_params = [{transform_indices = @transform_0, window_bounds = array<i64: 10, 128>}, {transform_indices = @transform_1, window_bounds = array<i64: 10>}, {transform_indices = @transform_2, window_bounds = array<i64: 1>}, {transform_indices = @transform_3, window_bounds = array<i64: 1, 128>}]} {
    %c0 = arith.constant 0 : index
    %c0_0 = arith.constant 0 : index
    %0 = vector.load %arg1[%c0, %c0_0] : memref<10x128xf32, #tpu.memory_space<vmem>>, vector<1x128xf32>
    %c0_1 = arith.constant 0 : index
    %1 = memref.load %arg2[%c0_1] : memref<10xf32, #tpu.memory_space<smem>>
    %2 = vector.broadcast %1 : f32 to vector<1x128xf32>
    %3 = arith.mulf %0, %2 : vector<1x128xf32>
    %c1 = arith.constant 1 : index
    %c0_2 = arith.constant 0 : index
    %4 = vector.load %arg1[%c1, %c0_2] : memref<10x128xf32, #tpu.memory_space<vmem>>, vector<1x128xf32>
    %c1_3 = arith.constant 1 : index
    %5 = memref.load %arg2[%c1_3] : memref<10xf32, #tpu.memory_space<smem>>
    %6 = vector.broadcast %5 : f32 to vector<1x128xf32>
    %7 = arith.mulf %4, %6 : vector<1x128xf32>
    %8 = arith.addf %3, %7 : vector<1x128xf32>
    %c2 = arith.constant 2 : index
    %c0_4 = arith.constant 0 : index
    %9 = vector.load %arg1[%c2, %c0_4] : memref<10x128xf32, #tpu.memory_space<vmem>>, vector<1x128xf32>
    %c2_5 = arith.constant 2 : index
    %10 = memref.load %arg2[%c2_5] : memref<10xf32, #tpu.memory_space<smem>>
    %11 = vector.broadcast %10 : f32 to vector<1x128xf32>
    %12 = arith.mulf %9, %11 : vector<1x128xf32>
    %13 = arith.addf %8, %12 : vector<1x128xf32>
    %c3 = arith.constant 3 : index
    %c0_6 = arith.constant 0 : index
    %14 = vector.load %arg1[%c3, %c0_6] : memref<10x128xf32, #tpu.memory_space<vmem>>, vector<1x128xf32>
    %c3_7 = arith.constant 3 : index
    %15 = memref.load %arg2[%c3_7] : memref<10xf32, #tpu.memory_space<smem>>
    %16 = vector.broadcast %15 : f32 to vector<1x128xf32>
    %17 = arith.mulf %14, %16 : vector<1x128xf32>
    %18 = arith.addf %13, %17 : vector<1x128xf32>
    %c4 = arith.constant 4 : index
    %c0_8 = arith.constant 0 : index
    %19 = vector.load %arg1[%c4, %c0_8] : memref<10x128xf32, #tpu.memory_space<vmem>>, vector<1x128xf32>
    %c4_9 = arith.constant 4 : index
    %20 = memref.load %arg2[%c4_9] : memref<10xf32, #tpu.memory_space<smem>>
    %21 = vector.broadcast %20 : f32 to vector<1x128xf32>
    %22 = arith.mulf %19, %21 : vector<1x128xf32>
    %23 = arith.addf %18, %22 : vector<1x128xf32>
    %c5 = arith.constant 5 : index
    %c0_10 = arith.constant 0 : index
    %24 = vector.load %arg1[%c5, %c0_10] : memref<10x128xf32, #tpu.memory_space<vmem>>, vector<1x128xf32>
    %c5_11 = arith.constant 5 : index
    %25 = memref.load %arg2[%c5_11] : memref<10xf32, #tpu.memory_space<smem>>
    %26 = vector.broadcast %25 : f32 to vector<1x128xf32>
    %27 = arith.mulf %24, %26 : vector<1x128xf32>
    %28 = arith.addf %23, %27 : vector<1x128xf32>
    %c6 = arith.constant 6 : index
    %c0_12 = arith.constant 0 : index
    %29 = vector.load %arg1[%c6, %c0_12] : memref<10x128xf32, #tpu.memory_space<vmem>>, vector<1x128xf32>
    %c6_13 = arith.constant 6 : index
    %30 = memref.load %arg2[%c6_13] : memref<10xf32, #tpu.memory_space<smem>>
    %31 = vector.broadcast %30 : f32 to vector<1x128xf32>
    %32 = arith.mulf %29, %31 : vector<1x128xf32>
    %33 = arith.addf %28, %32 : vector<1x128xf32>
    %c7 = arith.constant 7 : index
    %c0_14 = arith.constant 0 : index
    %34 = vector.load %arg1[%c7, %c0_14] : memref<10x128xf32, #tpu.memory_space<vmem>>, vector<1x128xf32>
    %c7_15 = arith.constant 7 : index
    %35 = memref.load %arg2[%c7_15] : memref<10xf32, #tpu.memory_space<smem>>
    %36 = vector.broadcast %35 : f32 to vector<1x128xf32>
    %37 = arith.mulf %34, %36 : vector<1x128xf32>
    %38 = arith.addf %33, %37 : vector<1x128xf32>
    %c8 = arith.constant 8 : index
    %c0_16 = arith.constant 0 : index
    %39 = vector.load %arg1[%c8, %c0_16] : memref<10x128xf32, #tpu.memory_space<vmem>>, vector<1x128xf32>
    %c8_17 = arith.constant 8 : index
    %40 = memref.load %arg2[%c8_17] : memref<10xf32, #tpu.memory_space<smem>>
    %41 = vector.broadcast %40 : f32 to vector<1x128xf32>
    %42 = arith.mulf %39, %41 : vector<1x128xf32>
    %43 = arith.addf %38, %42 : vector<1x128xf32>
    %c9 = arith.constant 9 : index
    %c0_18 = arith.constant 0 : index
    %44 = vector.load %arg1[%c9, %c0_18] : memref<10x128xf32, #tpu.memory_space<vmem>>, vector<1x128xf32>
    %c9_19 = arith.constant 9 : index
    %45 = memref.load %arg2[%c9_19] : memref<10xf32, #tpu.memory_space<smem>>
    %46 = vector.broadcast %45 : f32 to vector<1x128xf32>
    %47 = arith.mulf %44, %46 : vector<1x128xf32>
    %48 = arith.addf %43, %47 : vector<1x128xf32>
    %c0_20 = arith.constant 0 : index
    %49 = memref.load %arg3[%c0_20] : memref<1xf32, #tpu.memory_space<smem>>
    %50 = vector.broadcast %49 : f32 to vector<1x128xf32>
    %51 = arith.addf %48, %50 : vector<1x128xf32>
    %c0_21 = arith.constant 0 : index
    %c0_22 = arith.constant 0 : index
    %52 = vector.load %arg4[%c0_21, %c0_22] : memref<1x128xf32, #tpu.memory_space<vmem>>, vector<1x128xf32>
    tpu.vector_store %arg4[%c0_21, %c0_22], %51 {strides = array<i32>} : memref<1x128xf32, #tpu.memory_space<vmem>>, vector<1x128xf32>,
    return
  }
  func.func @transform_0(%arg0: i32) -> (i32, i32) {
    %c0_i32 = arith.constant 0 : i32
    %c0_i32_0 = arith.constant 0 : i32
    return %c0_i32, %arg0 : i32, i32
  }
  func.func @transform_1(%arg0: i32) -> i32 {
    %c0_i32 = arith.constant 0 : i32
    %c0_i32_0 = arith.constant 0 : i32
    return %c0_i32 : i32
  }
  func.func @transform_2(%arg0: i32) -> i32 {
    %c0_i32 = arith.constant 0 : i32
    %c0_i32_0 = arith.constant 0 : i32
    return %c0_i32 : i32
  }
  func.func @transform_3(%arg0: i32) -> (i32, i32) {
    %c0_i32 = arith.constant 0 : i32
    %c0_i32_0 = arith.constant 0 : i32
    return %c0_i32, %arg0 : i32, i32
  }
}

</mosaic_0001>

<llo_original>
// kernel: tpu_custom_call.1
$region0: #{tpu_custom_call.1}
  #allocation0 [shape = 'u32[]', space=smem, size = 0x4, offset = 0x4, fixed_abs, tag = 'smem constant byte address 0x4 - core index']
  #allocation1 [shape = 'u32[72,128]{1,0:T(1,128)}', space=vmem, size = 0x9000, scoped, tag = 'internal scratch']
  #allocation2 [shape = 'f32[1]{0:T(128)S(6)}', space=smem, size = 0x200, scoped, tag = 'scoped memory for tpu_custom_call.1']
  %s0 = inlined_call_operand.vmem [shape: f32[10,1], index: 0, kind: input, shape index: {}]
  %s1 = inlined_call_operand.vmem [shape: f32[10], index: 1, kind: input, shape index: {}]
  %s2 = inlined_call_operand.<no memory space> [shape: f32[1], index: 2, kind: input, shape index: {}]
  %s3 = inlined_call_operand.hbm [shape: f32[1,1], index: 3, kind: output, shape index: {}]
  %s4 = sld [smem:[#allocation0]]
  $region26: #{tpu_custom_call.1} parent=0
    _
  %s6 = ssub.s32 1, %s4
  %s7 = scalar_select 0, %s6, %s4
  %8 = sst [smem:[#allocation2]] %s2
  $region1: #{tpu_custom_call.1} parent=0
    #allocation3 [shape = 'u8[512]{0}', space=smem, size = 0x200, scoped, tag = 'input window, operand 1, single buffered']
    #allocation4 [shape = 's32[1]{0}', space=sflag, size = 0x4, scoped, tag = 'scoped memory for tpu_custom_call.1']
    #allocation5 [shape = 's32[1]{0}', space=sflag, size = 0x4, scoped, tag = 'scoped memory for tpu_custom_call.1']
    #allocation6 [shape = 'u8[512]{0}', space=vmem, size = 0x400, scoped, tag = 'output window, operand 0, single buffered']
    %9 = vsyncpa [#allocation5], 0
    %10 = vsyncpa [#allocation4], 0
    // Predicated region
    $region2: #{tpu_custom_call.1} parent=1 // pred_check
      _
    $region3: #{tpu_custom_call.1} parent=1 // pred_check_branch
      %12 = sbr.rel (0) target = $region5
    $region4: #{tpu_custom_call.1} parent=1 // pred_region
      _
    $region5: #{tpu_custom_call.1} parent=1 // pred_fallthru
      _
    // Predicated region
    $region6: #{tpu_custom_call.1} parent=1 // pred_check
      _
    $region7: #{tpu_custom_call.1} parent=1 // pred_check_branch
      %14 = sbr.rel (0) target = $region9
    $region8: #{tpu_custom_call.1} parent=1 // pred_region
      %16 = vsyncadd [#allocation5], 0
      %s18 = sshll.u32 %s1, 4
      %s19 = int_to_ptr.vmem [resolvable:$true] %s18
      %21 = dma.vmem_to_smem %s19, 16, [#allocation3], [#allocation5]
    $region9: #{tpu_custom_call.1} parent=1 // pred_fallthru
      _
    // Predicated region
    $region10: #{tpu_custom_call.1} parent=1 // pred_check
      _
    $region11: #{tpu_custom_call.1} parent=1 // pred_check_branch
      %23 = sbr.rel (0) target = $region13
    $region12: #{tpu_custom_call.1} parent=1 // pred_region
      _
    $region13: #{tpu_custom_call.1} parent=1 // pred_fallthru
      _
    // Predicated region
    $region14: #{tpu_custom_call.1} parent=1 // pred_check
      _
    $region15: #{tpu_custom_call.1} parent=1 // pred_check_branch
      %25 = sbr.rel (0) target = $region17
    $region16: #{tpu_custom_call.1} parent=1 // pred_region
      %27 = dma.done [#allocation5], 16
    $region17: #{tpu_custom_call.1} parent=1 // pred_fallthru
      _
    %28 = sfence
    %v29 = vld [vmem:[%s0] sm:$0x1]
    %s30 = sld [smem:[#allocation3]]
    %v31 = vstv %s30
    %v32 = vmul.f32 %v29, %v31
    %v33 = vld [vmem:[%s0 + $0x1] sm:$0x1]
    %s34 = sld [smem:[#allocation3 + $0x1]]
    %v35 = vstv %s34
    %v36 = vmul.f32 %v33, %v35
    %v37 = vadd.f32 %v32, %v36
    %v38 = vld [vmem:[%s0 + $0x2] sm:$0x1]
    %s39 = sld [smem:[#allocation3 + $0x2]]
    %v40 = vstv %s39
    %v41 = vmul.f32 %v38, %v40
    %v42 = vadd.f32 %v37, %v41
    %v43 = vld [vmem:[%s0 + $0x3] sm:$0x1]
    %s44 = sld [smem:[#allocation3 + $0x3]]
    %v45 = vstv %s44
    %v46 = vmul.f32 %v43, %v45
    %v47 = vadd.f32 %v42, %v46
    %v48 = vld [vmem:[%s0 + $0x4] sm:$0x1]
    %s49 = sld [smem:[#allocation3 + $0x4]]
    %v50 = vstv %s49
    %v51 = vmul.f32 %v48, %v50
    %v52 = vadd.f32 %v47, %v51
    %v53 = vld [vmem:[%s0 + $0x5] sm:$0x1]
    %s54 = sld [smem:[#allocation3 + $0x5]]
    %v55 = vstv %s54
    %v56 = vmul.f32 %v53, %v55
    %v57 = vadd.f32 %v52, %v56
    %v58 = vld [vmem:[%s0 + $0x6] sm:$0x1]
    %s59 = sld [smem:[#allocation3 + $0x6]]
    %v60 = vstv %s59
    %v61 = vmul.f32 %v58, %v60
    %v62 = vadd.f32 %v57, %v61
    %v63 = vld [vmem:[%s0 + $0x7] sm:$0x1]
    %s64 = sld [smem:[#allocation3 + $0x7]]
    %v65 = vstv %s64
    %v66 = vmul.f32 %v63, %v65
    %v67 = vadd.f32 %v62, %v66
    %v68 = vld [vmem:[%s0 + $0x8] sm:$0x1]
    %s69 = sld [smem:[#allocation3 + $0x8]]
    %v70 = vstv %s69
    %v71 = vmul.f32 %v68, %v70
    %v72 = vadd.f32 %v67, %v71
    %v73 = vld [vmem:[%s0 + $0x9] sm:$0x1]
    %s74 = sld [smem:[#allocation3 + $0x9]]
    %v75 = vstv %s74
    %v76 = vmul.f32 %v73, %v75
    %v77 = vadd.f32 %v72, %v76
    %s78 = sld [smem:[#allocation2]]
    %v79 = vstv %s78
    %v80 = vadd.f32 %v77, %v79
    %81 = vst [vmem:[#allocation6] sm:$0x1] %v80
    // Predicated region
    $region18: #{tpu_custom_call.1} parent=1 // pred_check
      _
    $region19: #{tpu_custom_call.1} parent=1 // pred_check_branch
      %83 = sbr.rel (0) target = $region21
    $region20: #{tpu_custom_call.1} parent=1 // pred_region
      %85 = vsyncadd [#allocation4], 0
      %s87 = sshll.u32 [#allocation6], 4
      %s88 = int_to_ptr.vmem [resolvable:$true] %s87
      %s89 = sshll.u32 %s3, 4
      %s90 = int_to_ptr.hbm [resolvable:$true] %s89
      %92 = dma.vmem_to_hbm [thread:$0]  %s88, 16, %s90, [#allocation4]
    $region21: #{tpu_custom_call.1} parent=1 // pred_fallthru
      _
    // Predicated region
    $region22: #{tpu_custom_call.1} parent=1 // pred_check
      _
    $region23: #{tpu_custom_call.1} parent=1 // pred_check_branch
      %94 = sbr.rel (0) target = $region25
    $region24: #{tpu_custom_call.1} parent=1 // pred_region
      %96 = dma.done [#allocation4], 16
    $region25: #{tpu_custom_call.1} parent=1 // pred_fallthru
      _
    %97 = vsyncpa [#allocation4], 1
    %98 = vsyncpa [#allocation5], 1

</llo_original>
